<compile_context>
chip_gen: v7x
topology: tpu7x:2x2x1
jax: 0.10.0
libtpu: 0.0.40
codegen_flags: <defaults>
</compile_context>

<pallas_src>
import jax
import jax.numpy as jnp
from jax.experimental import pallas as pl
from jax.experimental.pallas import tpu as pltpu


def _round_up(x, m):
    return (x + m - 1) // m * m


def _gather_kernel(ids_ref, mask_ref, table_ref, out_ref, buf_ref, sem_ref):
    # ids_ref:   (num_rows_padded,) int32, SMEM (scalar prefetch) -- row ids
    # mask_ref:  (rows_tile, 1)     f32,   VMEM -- per-row validity mask
    # table_ref: (V, D)             f32,   HBM (pl.ANY) -- embedding table
    # out_ref:   (rows_tile, D)     f32,   VMEM output block
    # buf_ref:   (rows_tile, D)     f32,   VMEM scratch (gather destination)
    # sem_ref:   (1,) DMA semaphore
    rows_tile = buf_ref.shape[0]
    base = pl.program_id(0) * rows_tile

    # Issue one row DMA per output row: table[ids[base + r]] -> buf[r].
    @pl.loop(0, rows_tile)
    def _(r):
        idx = ids_ref[base + r]
        pltpu.make_async_copy(
            table_ref.at[pl.ds(idx, 1), :],
            buf_ref.at[pl.ds(r, 1), :],
            sem_ref.at[0],
        ).start()

    # Wait for all row copies.  All copies share one semaphore and have the
    # same (1, D) size, so rows_tile waits cover rows_tile completions; every
    # DMA is complete before buf_ref is read below.
    @pl.loop(0, rows_tile)
    def _(r):
        pltpu.make_async_copy(
            table_ref.at[pl.ds(0, 1), :],
            buf_ref.at[pl.ds(r, 1), :],
            sem_ref.at[0],
        ).wait()

    # Fused length mask + lane-dense store.
    out_ref[...] = (buf_ref[...] * mask_ref[...]).astype(out_ref.dtype)


def embedding_lookup(ids, table, lengths=None, rows_tile_cap=128):
    """Pallas embedding gather: returns table[ids] with shape (B, S, D).

    If `lengths` is given, positions s >= lengths[b] are zeroed (mask is fused
    into the kernel; no second pass over the output).
    """
    B, S = ids.shape
    V, D = table.shape
    num_rows = B * S

    rows_tile = min(int(rows_tile_cap), _round_up(num_rows, 8))
    num_padded = _round_up(num_rows, rows_tile)

    # Flatten + clamp ids (torch raises on out-of-range ids; we clamp so the
    # gather DMA stays in bounds).
    flat_ids = jnp.clip(ids.reshape(-1).astype(jnp.int32), 0, V - 1)

    if lengths is None:
        row_mask = jnp.ones((num_rows,), dtype=table.dtype)
    else:
        row_mask = (jnp.arange(S, dtype=jnp.int32)[None, :]
                    < lengths.astype(jnp.int32)[:, None]).astype(table.dtype)
        row_mask = row_mask.reshape(-1)

    pad = num_padded - num_rows
    if pad:
        flat_ids = jnp.pad(flat_ids, (0, pad))
        row_mask = jnp.pad(row_mask, (0, pad))
    row_mask = row_mask[:, None]  # (num_padded, 1)

    grid = (num_padded // rows_tile,)

    out_flat = pl.pallas_call(
        _gather_kernel,
        out_shape=jax.ShapeDtypeStruct((num_padded, D), table.dtype),
        grid_spec=pltpu.PrefetchScalarGridSpec(
            num_scalar_prefetch=1,                                   # flat_ids -> SMEM
            grid=grid,
            in_specs=[
                pl.BlockSpec((rows_tile, 1), lambda t, ids: (t, 0)),  # mask (VMEM)
                pl.BlockSpec(memory_space=pl.ANY),                    # table stays in HBM
            ],
            out_specs=pl.BlockSpec((rows_tile, D), lambda t, ids: (t, 0)),
            scratch_shapes=[
                pltpu.VMEM((rows_tile, D), table.dtype),              # gather buffer
                pltpu.SemaphoreType.DMA((1,)),
            ],
        ),
        compiler_params=pltpu.CompilerParams(
            dimension_semantics=("parallel",),
            vmem_limit_bytes=32 * 1024 * 1024,
        ),
    )(flat_ids, row_mask, table)

    if pad:
        out_flat = out_flat[:num_rows]
    return out_flat.reshape(B, S, D)


def embedding_packable_forward(inputs, table, lengths=None):
    """JAX analogue of EmbeddingPackable.forward.

    - lengths is None  -> plain-tensor branch: embd_layer(input).
    - lengths given    -> PackedSequence branch: embed padded ids with the
      length mask fused into the kernel.
    """
    if lengths is None:
        return embedding_lookup(inputs, table)
    # TODO(synk): torch.nn.utils.rnn.pack_padded_sequence re-packing (data
    # reordering into a PackedSequence container) has no Pallas/JAX
    # equivalent; we return padded, length-masked embeddings plus the lengths.
    return embedding_lookup(inputs, table, lengths=lengths), lengths


if __name__ == "__main__":
    B, S, V, D = 2, 8, 128, 128

    key = jax.random.PRNGKey(0)
    k_ids, k_tbl, _ = jax.random.split(key, 3)

    ids = jax.random.randint(k_ids, (B, S), 0, V, dtype=jnp.int32)
    table = jax.random.normal(k_tbl, (V, D), dtype=jnp.float32)  # nn.Embedding(V, D).weight
    lengths = jnp.array([S, S - 3], dtype=jnp.int32)

    # Plain-tensor branch.
    out = embedding_packable_forward(ids, table)
    out = jax.block_until_ready(out)

    # PackedSequence-style branch (padded + length-masked, mask fused in-kernel).
    out_packed, _ = embedding_packable_forward(ids, table, lengths=lengths)
    out_packed = jax.block_until_ready(out_packed)

    # Correctness check against a pure-JAX reference gather.
    ref = jnp.take(table, ids, axis=0)
    assert out.shape == (B, S, D)
    assert jnp.allclose(out, ref, atol=1e-6), "embedding lookup mismatch"
    ref_masked = ref * (jnp.arange(S)[None, :] < lengths[:, None])[:, :, None]
    assert jnp.allclose(out_packed, ref_masked, atol=1e-6), "masked branch mismatch"

    print("KERNEL_OK")
</pallas_src>

<mosaic_0001>
module attributes {stable_mosaic.version = 11 : i64} {
  func.func @_gather_kernel(%arg0: i32, %arg1: memref<16xi32, #tpu.memory_space<smem>>, %arg2: memref<16x1xf32, #tpu.memory_space<vmem>>, %arg3: memref<128x128xf32, #tpu.memory_space<any>>, %arg4: memref<16x128xf32, #tpu.memory_space<vmem>>, %arg5: memref<16x128xf32, #tpu.memory_space<vmem>>, %arg6: memref<1x!tpu.dma_semaphore, #tpu.memory_space<semaphore_mem>>) attributes {dimension_semantics = [#tpu.dimension_semantics<parallel>], iteration_bounds = array<i64: 1>, scalar_prefetch = 1 : i64, scratch_operands = 2 : i64, tpu.core_type = #tpu.core_type<tc>, window_params = [{transform_indices = @transform_0, window_bounds = array<i64: 16, 1>}, {}, {transform_indices = @transform_2, window_bounds = array<i64: 16, 128>}]} {
    %c16_i32 = arith.constant 16 : i32
    %0 = arith.muli %arg0, %c16_i32 : i32
    %c0_i32 = arith.constant 0 : i32
    %c16_i32_0 = arith.constant 16 : i32
    %1 = arith.addi %c0_i32, %c16_i32_0 : i32
    %c1_i32 = arith.constant 1 : i32
    scf.for %arg7 = %c0_i32 to %1 step %c1_i32  : i32 {
      %c1_i32_11 = arith.constant 1 : i32
      %8 = arith.muli %arg7, %c1_i32_11 : i32
      %c0_i32_12 = arith.constant 0 : i32
      %9 = arith.addi %c0_i32_12, %8 : i32
      %10 = arith.addi %0, %9 : i32
      %11 = arith.index_cast %10 : i32 to index
      %12 = memref.load %arg1[%11] : memref<16xi32, #tpu.memory_space<smem>>
      %c0_i32_13 = arith.constant 0 : i32
      %c0_i32_14 = arith.constant 0 : i32
      %13 = tpu.memref_slice %arg3[%12, %c0_i32_14] : memref<128x128xf32, #tpu.memory_space<any>> -> memref<1x128xf32, #tpu.memory_space<any>>
      %c0_i32_15 = arith.constant 0 : i32
      %14 = tpu.memref_slice %arg5[%9, %c0_i32_15] : memref<16x128xf32, #tpu.memory_space<vmem>> -> memref<1x128xf32, #tpu.memory_space<vmem>>
      %15 = tpu.memref_slice %arg6[%c0_i32_13] : memref<1x!tpu.dma_semaphore, #tpu.memory_space<semaphore_mem>> -> memref<1x!tpu.dma_semaphore, #tpu.memory_space<semaphore_mem>>
      %16 = tpu.memref_squeeze %15 : memref<1x!tpu.dma_semaphore, #tpu.memory_space<semaphore_mem>> -> memref<!tpu.dma_semaphore, #tpu.memory_space<semaphore_mem>>
      tpu.enqueue_dma source(%13 : memref<1x128xf32, #tpu.memory_space<any>>) target(%14 : memref<1x128xf32, #tpu.memory_space<vmem>>) target_semaphore(%16 : memref<!tpu.dma_semaphore, #tpu.memory_space<semaphore_mem>>)
    }
    %c16_i32_1 = arith.constant 16 : i32
    %c0_i32_2 = arith.constant 0 : i32
    %c16_i32_3 = arith.constant 16 : i32
    %2 = arith.addi %c0_i32_2, %c16_i32_3 : i32
    %c1_i32_4 = arith.constant 1 : i32
    scf.for %arg7 = %c0_i32_2 to %2 step %c1_i32_4  : i32 {
      %c1_i32_11 = arith.constant 1 : i32
      %8 = arith.muli %arg7, %c1_i32_11 : i32
      %c0_i32_12 = arith.constant 0 : i32
      %9 = arith.addi %c0_i32_12, %8 : i32
      %c0_i32_13 = arith.constant 0 : i32
      %c0_i32_14 = arith.constant 0 : i32
      %c0_i32_15 = arith.constant 0 : i32
      %10 = tpu.memref_slice %arg3[%c0_i32_14, %c0_i32_15] : memref<128x128xf32, #tpu.memory_space<any>> -> memref<1x128xf32, #tpu.memory_space<any>>
      %c0_i32_16 = arith.constant 0 : i32
      %11 = tpu.memref_slice %arg5[%9, %c0_i32_16] : memref<16x128xf32, #tpu.memory_space<vmem>> -> memref<1x128xf32, #tpu.memory_space<vmem>>
      %12 = tpu.memref_slice %arg6[%c0_i32_13] : memref<1x!tpu.dma_semaphore, #tpu.memory_space<semaphore_mem>> -> memref<1x!tpu.dma_semaphore, #tpu.memory_space<semaphore_mem>>
      %13 = tpu.memref_squeeze %12 : memref<1x!tpu.dma_semaphore, #tpu.memory_space<semaphore_mem>> -> memref<!tpu.dma_semaphore, #tpu.memory_space<semaphore_mem>>
      tpu.wait_dma2 semaphore(%13 : memref<!tpu.dma_semaphore, #tpu.memory_space<semaphore_mem>>) src(%10 : memref<1x128xf32, #tpu.memory_space<any>>) dst(%11 : memref<1x128xf32, #tpu.memory_space<vmem>>)
    }
    %c16_i32_5 = arith.constant 16 : i32
    %c0 = arith.constant 0 : index
    %c0_6 = arith.constant 0 : index
    %3 = vector.load %arg5[%c0, %c0_6] : memref<16x128xf32, #tpu.memory_space<vmem>>, vector<16x128xf32>
    %c0_7 = arith.constant 0 : index
    %c0_8 = arith.constant 0 : index
    %4 = vector.load %arg2[%c0_7, %c0_8] : memref<16x1xf32, #tpu.memory_space<vmem>>, vector<16x1xf32>
    %5 = vector.broadcast %4 : vector<16x1xf32> to vector<16x128xf32>
    %6 = arith.mulf %3, %5 : vector<16x128xf32>
    %c0_9 = arith.constant 0 : index
    %c0_10 = arith.constant 0 : index
    %7 = vector.load %arg4[%c0_9, %c0_10] : memref<16x128xf32, #tpu.memory_space<vmem>>, vector<16x128xf32>
    tpu.vector_store %arg4[%c0_9, %c0_10], %6 {strides = array<i32>} : memref<16x128xf32, #tpu.memory_space<vmem>>, vector<16x128xf32>,
    return
  }
  func.func @transform_0(%arg0: i32, %arg1: memref<16xi32, #tpu.memory_space<smem>>) -> (i32, i32) {
    %c0_i32 = arith.constant 0 : i32
    %c0_i32_0 = arith.constant 0 : i32
    return %arg0, %c0_i32 : i32, i32
  }
  func.func @transform_2(%arg0: i32, %arg1: memref<16xi32, #tpu.memory_space<smem>>) -> (i32, i32) {
    %c0_i32 = arith.constant 0 : i32
    %c0_i32_0 = arith.constant 0 : i32
    return %arg0, %c0_i32 : i32, i32
  }
}

</mosaic_0001>

<llo_original>
// kernel: tpu_custom_call.1
$region0: #{tpu_custom_call.1}
  #allocation0 [shape = 'u32[]', space=smem, size = 0x4, offset = 0x4, fixed_abs, tag = 'smem constant byte address 0x4 - core index']
  #allocation1 [shape = 'u32[144,128]{1,0:T(1,128)}', space=vmem, size = 0x12000, scoped, tag = 'internal scratch']
  #allocation2 [shape = 'f32[16,128]{1,0:T(8,128)}', space=vmem, size = 0x2000, scoped, tag = 'scratch operand']
  #allocation3 [shape = 's32[1]{0}', space=sflag, size = 0x4, scoped, tag = 'scratch operand']
  #allocation4 [shape = 's32[1]{0}', space=sflag, size = 0x4, scoped, tag = 'scoped memory for tpu_custom_call.1']
  #allocation5 [shape = 'u8[512]{0}', space=smem, size = 0x200, scoped, tag = 'prefetched SMEM operand 0']
  #allocation8 [shape = 's32[]', space=sflag, size = 0x4, offset = 0, fixed_abs, tag = 'sflag constant byte address 0x0 - dummy sync flag']
  #allocation9 [shape = 's32[]', space=sflag, size = 0x4, offset = 0, fixed_abs, tag = 'sflag constant byte address 0x0 - dummy sync flag']
  #allocation10 [shape = 'u32[]', space=smem, size = 0x4, offset = 0x44, fixed_abs, tag = 'smem constant byte address 0x44 - assertion arg 0']
  #allocation11 [shape = 'u32[]', space=smem, size = 0x4, offset = 0x48, fixed_abs, tag = 'smem constant byte address 0x48 - assertion arg 1']
  %s0 = inlined_call_operand.vmem [shape: s32[16], index: 0, kind: input, shape index: {}]
  %s1 = inlined_call_operand.vmem [shape: f32[16,1], index: 1, kind: input, shape index: {}]
  %s2 = inlined_call_operand.hbm [shape: f32[128,128], index: 2, kind: input, shape index: {}]
  %s3 = inlined_call_operand.hbm [shape: f32[16,128], index: 3, kind: output, shape index: {}]
  %s4 = sld [smem:[#allocation0]]
  $region32: #{tpu_custom_call.1} parent=0
    _
  %s6 = ssub.s32 1, %s4
  %s7 = scalar_select 0, %s6, %s4
  %s8 = sshll.u32 %s0, 4
  %s9 = int_to_ptr.vmem [resolvable:$true] %s8
  %11 = dma.vmem_to_smem %s9, 16, [#allocation5], [#allocation4]
  %12 = dma.done [#allocation4], 16
  %13 = sfence
  $region1: #{tpu_custom_call.1} parent=0
    #allocation6 [shape = 'u8[8192]{0}', space=vmem, size = 0x2000, scoped, tag = 'output window, operand 0, single buffered']
    #allocation7 [shape = 's32[1]{0}', space=sflag, size = 0x4, scoped, tag = 'scoped memory for tpu_custom_call.1']
    %14 = vsyncpa [#allocation7], 0
    // Predicated region
    $region2: #{tpu_custom_call.1} parent=1 // pred_check
      _
    $region3: #{tpu_custom_call.1} parent=1 // pred_check_branch
      %16 = sbr.rel (0) target = $region5
    $region4: #{tpu_custom_call.1} parent=1 // pred_region
      _
    $region5: #{tpu_custom_call.1} parent=1 // pred_fallthru
      _
    %s17 = smul.u32 0, 16
    loop: start=0, step=1, limit=16
    $region6: #{tpu_custom_call.1} parent=1 // loop_pre_header
      _
    $region7: #{tpu_custom_call.1} parent=1 // loop_header
      %s19 = sphi 0, %s23
      %p20 = scmp.ge.s32.totalorder %s19, 16
    $region8: #{tpu_custom_call.1} parent=1 // loop_header_branch
      %22 = sbr.rel (%p20) target = $region12
    $region9: #{tpu_custom_call.1} parent=1 // loop_body
      %s24 = sadd.s32 %s17, %s19
      %s25 = sld [smem:[#allocation5 + %s24]]
      %s26 = smul.addr %s25, 16
      %s27 = scalar_lea.hbm %s2, %s26
      %s28 = scalar_lea.vmem [#allocation2], %s19
      // Predicated region
      $region13: #{tpu_custom_call.1} parent=9 // pred_check
        _
      $region14: #{tpu_custom_call.1} parent=9 // pred_check_branch
        %30 = sbr.rel target = $region16
      $region15: #{tpu_custom_call.1} parent=9 // pred_region
        %31 = sst [smem:[#allocation10]] [#allocation9]
        %32 = sst [smem:[#allocation11]] [#allocation8]
      $region16: #{tpu_custom_call.1} parent=9 // pred_fallthru
        _
      %34 = shalt.err (0)
      %s36 = sshll.u32 %s28, 4
      %s37 = int_to_ptr.vmem [resolvable:$true] %s36
      %39 = dma.hbm_to_vmem [thread:$0]  %s27, 16, %s37, [#allocation3]
    $region10: #{tpu_custom_call.1} parent=1 // loop_footer
      %s23 = sadd.s32 1, %s19
    $region11: #{tpu_custom_call.1} parent=1 // loop_footer_branch
      %18 = sbr.rel target = $region7
    $region12: #{tpu_custom_call.1} parent=1 // loop_exit
      _
    loop: start=0, step=1, limit=16
    $region17: #{tpu_custom_call.1} parent=1 // loop_pre_header
      _
    $region18: #{tpu_custom_call.1} parent=1 // loop_header
      %s41 = sphi 0, %s45
      %p42 = scmp.ge.s32.totalorder %s41, 16
    $region19: #{tpu_custom_call.1} parent=1 // loop_header_branch
      %44 = sbr.rel (%p42) target = $region23
    $region20: #{tpu_custom_call.1} parent=1 // loop_body
      %s46 = smul.u32 1, 1
      %s47 = sshll.u32 %s46, 4
      %48 = dma.done [#allocation3], %s47
    $region21: #{tpu_custom_call.1} parent=1 // loop_footer
      %s45 = sadd.s32 1, %s41
    $region22: #{tpu_custom_call.1} parent=1 // loop_footer_branch
      %40 = sbr.rel target = $region18
    $region23: #{tpu_custom_call.1} parent=1 // loop_exit
      _
    %v49 = vld [vmem:[#allocation2] sm:$0xff]
    %v50 = vld [vmem:[#allocation2 + $0x8] sm:$0xff]
    %v51 = vld [vmem:[%s1] sm:$0xff]
    %v52 = vld [vmem:[%s1 + $0x8] sm:$0xff]
    %54 = vset.pattern.permute.xlu0 0
    %55 = vperm.xlu0 %54, %v51
    %v56 = vpop.permute.xlu0 %55
    %59 = vset.pattern.permute.xlu0 0
    %60 = vperm.xlu0 %59, %v52
    %v61 = vpop.permute.xlu0 %60
    %v63 = vmul.f32 %v49, %v56
    %v64 = vmul.f32 %v50, %v61
    %65 = vst [vmem:[#allocation6] sm:$0xff] %v63
    %66 = vst [vmem:[#allocation6 + $0x8] sm:$0xff] %v64
    // Predicated region
    $region24: #{tpu_custom_call.1} parent=1 // pred_check
      _
    $region25: #{tpu_custom_call.1} parent=1 // pred_check_branch
      %68 = sbr.rel (0) target = $region27
    $region26: #{tpu_custom_call.1} parent=1 // pred_region
      %s70 = ssub.s32 256, 256
      %71 = vsyncadd [#allocation7], %s70
      %s72 = sshll.u32 [#allocation6], 4
      %s73 = int_to_ptr.vmem [resolvable:$true] %s72
      %78 = dma.vmem_to_hbm [thread:$0]  %s73, 256, %s3, [#allocation7], 128, 128, 8
    $region27: #{tpu_custom_call.1} parent=1 // pred_fallthru
      _
    // Predicated region
    $region28: #{tpu_custom_call.1} parent=1 // pred_check
      _
    $region29: #{tpu_custom_call.1} parent=1 // pred_check_branch
      %80 = sbr.rel (0) target = $region31
    $region30: #{tpu_custom_call.1} parent=1 // pred_region
      %81 = dma.done [#allocation7], 256
    $region31: #{tpu_custom_call.1} parent=1 // pred_fallthru
      _
    %82 = vsyncpa [#allocation7], 1
  %83 = vsyncmov [#allocation3]
  %s84 = vpop.sfrf %83
  %p85 = scmp.eq.s32.totalorder %s84, 0
  %p86 = pneg %p85
  %88 = shalt.err (%p86)

</llo_original>
